<compile_context>
chip_gen: v7x
topology: tpu7x:2x2x1
jax: 0.10.0
libtpu: 0.0.40
codegen_flags: <defaults>
</compile_context>

<pallas_src>
import functools

import jax
import jax.numpy as jnp
from jax import lax
from jax.experimental import pallas as pl
from jax.experimental.pallas import tpu as pltpu

_LANE = 128
_SUBLANE = 8


def _cdiv(a: int, b: int) -> int:
    return -(-a // b)


def _round_up(v: int, m: int) -> int:
    return ((v + m - 1) // m) * m


@functools.lru_cache(maxsize=None)
def _vmem_budget_bytes() -> int:
    """Per-generation VMEM budget: ~75% of physical, capped at 100 MiB.

    v7x (64 MiB/TC) -> 48 MiB;  v5e/v6e (128 MiB) -> 96 MiB.  Falls back to a
    conservative 48 MiB if the query is unavailable.
    """
    cap = 64 * 1024 * 1024
    try:
        cap = int(pltpu.get_tpu_info().vmem_capacity_bytes)
    except Exception:
        pass
    return min(cap * 3 // 4, 100 * 1024 * 1024)


def _choose_tiles(C: int, S: int, itemsize: int, budget_bytes: int):
    """Pick (Ct, St).  Ct == C or a multiple of 8; St == S or a multiple of 128.

    Target ~4 MiB blocks: big blocks amortize the ~0.35 us per-grid-step overhead
    (matters most at v7x HBM rates) while 2x(in)+2x(out) buffers stay well under
    the VMEM budget.
    """
    target_elems = max(_SUBLANE * _LANE,
                       min(4 * 1024 * 1024, budget_bytes // 12) // itemsize)
    if C * S <= target_elems:
        return C, S
    if S <= target_elems:
        ct = target_elems // S
        if ct >= C:
            return C, S
        ct = max(_SUBLANE, (ct // _SUBLANE) * _SUBLANE)
        return min(ct, C), S
    # Even an 8-channel slab of full S is too big: tile the spatial axis too.
    ct = C if C <= _SUBLANE else _SUBLANE
    st = max(_LANE, (target_elems // ct) // _LANE * _LANE)
    return ct, min(st, S)


# ----------------------------------------------------------------------------
# Whole-sample kernel: one grid step = one batch sample resident in VMEM.
#   x block (1, C, S), gamma/beta blocks (1, C, 1).
# Exact two-pass statistics (free: data is VMEM resident), rsqrt via EUP,
# affine folded into per-channel scale/bias -> 1 mul + 1 add per element.
# ----------------------------------------------------------------------------
def _gln_full_kernel(x_ref, g_ref, b_ref, o_ref, *, eps: float, inv_n: float):
    # Pass 1: exact mean (f32 accumulation).
    mean = jnp.sum(x_ref[...].astype(jnp.float32)) * inv_n
    # Pass 2: exact centered variance (no E[x^2]-mean^2 cancellation).
    d = x_ref[...].astype(jnp.float32) - mean
    var = jnp.sum(d * d) * inv_n
    inv_std = lax.rsqrt(var + eps)                           # EUP, effectively free
    scale = g_ref[...].astype(jnp.float32) * inv_std         # (1, C, 1)
    bias = b_ref[...].astype(jnp.float32) - mean * scale     # (1, C, 1)
    # Re-read the ref for the apply (no pinned full-block f32 copy for bf16 inputs).
    o_ref[...] = (x_ref[...].astype(jnp.float32) * scale + bias).astype(o_ref.dtype)


# ----------------------------------------------------------------------------
# Tiled two-pass fallback (sample too big for VMEM).
# Stats kernel: each (b, ci, si) tile writes its own partial sum / sum-of-squares
# into a tiny private output block, so no cross-step accumulation is needed and
# every grid axis is "parallel".  Partial edge tiles are masked.
# ----------------------------------------------------------------------------
def _gln_stats_kernel(x_ref, sum_ref, ssq_ref, *, C: int, S: int,
                      mask_c: bool, mask_s: bool):
    blk_c, blk_s = x_ref.shape[1], x_ref.shape[2]
    xf = x_ref[...].astype(jnp.float32)                      # (1, Ct, St)
    if mask_c or mask_s:
        valid = None
        if mask_c:
            row = lax.broadcasted_iota(jnp.int32, (1, blk_c, blk_s), 1)
            valid = (row + pl.program_id(1) * blk_c) < C
        if mask_s:
            col = lax.broadcasted_iota(jnp.int32, (1, blk_c, blk_s), 2)
            vs = (col + pl.program_id(2) * blk_s) < S
            valid = vs if valid is None else (valid & vs)
        xf = jnp.where(valid, xf, 0.0)
    psum = jnp.sum(xf)
    pssq = jnp.sum(xf * xf)
    sum_ref[...] = jnp.zeros_like(sum_ref) + psum
    ssq_ref[...] = jnp.zeros_like(ssq_ref) + pssq


def _gln_apply_kernel(x_ref, g_ref, b_ref, mean_ref, istd_ref, o_ref):
    mean = mean_ref[0, 0, 0]
    inv_std = istd_ref[0, 0, 0]
    scale = g_ref[...].astype(jnp.float32) * inv_std         # (1, Ct, 1)
    bias = b_ref[...].astype(jnp.float32) - mean * scale
    # Edge-tile OOB lanes/rows are clipped on writeback; no masking needed here.
    o_ref[...] = (x_ref[...].astype(jnp.float32) * scale + bias).astype(o_ref.dtype)


# ----------------------------------------------------------------------------
# Wrapper
# ----------------------------------------------------------------------------
def mlayernorm(x, gamma, beta, eps: float = 1e-8, *,
               max_full_elems=None, tile_channels=None, tile_spatial=None):
    """x: [B, C, *spatial]; gamma/beta: [C]."""
    orig_shape = x.shape
    B, C = int(orig_shape[0]), int(orig_shape[1])
    S = 1
    for d in orig_shape[2:]:
        S *= int(d)
    S = max(S, 1)
    n_true = C * S
    inv_n = 1.0 / float(n_true)
    itemsize = jnp.dtype(x.dtype).itemsize
    budget = _vmem_budget_bytes()

    if max_full_elems is None:
        # Whole-sample path footprint ~ 2x(in)+2x(out) buffers; keep headroom for
        # compiler temporaries.  Dtype-aware (2x more bf16 elems fit than f32).
        max_full_elems = max(_SUBLANE * _LANE,
                             (budget - budget // 6) // (4 * itemsize))

    x3 = x.reshape(B, C, S)                       # contiguous collapse: free
    g3 = gamma.astype(jnp.float32).reshape(1, C, 1)
    b3 = beta.astype(jnp.float32).reshape(1, C, 1)

    # VMEM layout pads the last two dims to (8, 128); account for that here.
    padded_elems = _round_up(C, _SUBLANE) * _round_up(S, _LANE)

    if padded_elems <= max_full_elems:
        # ---------------- whole-sample path: 1 read + 1 write of x ----------------
        # NOTE(v7x, B==1): this path's only parallel axis is B; for a single huge
        # sample on a dual-TC part, force the tiled path (max_full_elems=0) to
        # shard the (channel, spatial) grid axes across both cores.
        out3 = pl.pallas_call(
            functools.partial(_gln_full_kernel, eps=float(eps), inv_n=inv_n),
            out_shape=jax.ShapeDtypeStruct((B, C, S), x.dtype),
            grid_spec=pltpu.PrefetchScalarGridSpec(
                num_scalar_prefetch=0,
                grid=(B,),
                in_specs=[
                    pl.BlockSpec((1, C, S), lambda b: (b, 0, 0)),
                    pl.BlockSpec((1, C, 1), lambda b: (0, 0, 0)),
                    pl.BlockSpec((1, C, 1), lambda b: (0, 0, 0)),
                ],
                out_specs=pl.BlockSpec((1, C, S), lambda b: (b, 0, 0)),
            ),
            compiler_params=pltpu.CompilerParams(
                dimension_semantics=("parallel",),
                vmem_limit_bytes=budget,
            ),
        )(x3, g3, b3)
        return out3.reshape(orig_shape)

    # ---------------- tiled two-pass path: 2 reads + 1 write of x ----------------
    Ct, St = _choose_tiles(C, S, itemsize, budget)
    if tile_channels is not None:
        Ct = int(tile_channels)
    if tile_spatial is not None:
        St = int(tile_spatial)
    if not (Ct == C or (0 < Ct <= C and Ct % _SUBLANE == 0)):
        raise ValueError(f"tile_channels must equal C or be a multiple of 8 <= C; got {Ct}")
    if not (St == S or (0 < St <= S and St % _LANE == 0)):
        raise ValueError(f"tile_spatial must equal S or be a multiple of 128 <= S; got {St}")

    nc, ns = _cdiv(C, Ct), _cdiv(S, St)
    mask_c = (C % Ct) != 0
    mask_s = (S % St) != 0

    # Pass 1: per-tile partial sums (tiny private output blocks; fully parallel grid).
    sum_out, ssq_out = pl.pallas_call(
        functools.partial(_gln_stats_kernel, C=C, S=S, mask_c=mask_c, mask_s=mask_s),
        out_shape=(
            jax.ShapeDtypeStruct((B, nc, ns, _SUBLANE, _LANE), jnp.float32),
            jax.ShapeDtypeStruct((B, nc, ns, _SUBLANE, _LANE), jnp.float32),
        ),
        grid_spec=pltpu.PrefetchScalarGridSpec(
            num_scalar_prefetch=0,
            grid=(B, nc, ns),
            in_specs=[pl.BlockSpec((1, Ct, St), lambda b, ci, si: (b, ci, si))],
            out_specs=(
                pl.BlockSpec((1, 1, 1, _SUBLANE, _LANE),
                             lambda b, ci, si: (b, ci, si, 0, 0)),
                pl.BlockSpec((1, 1, 1, _SUBLANE, _LANE),
                             lambda b, ci, si: (b, ci, si, 0, 0)),
            ),
        ),
        compiler_params=pltpu.CompilerParams(
            dimension_semantics=("parallel", "parallel", "parallel"),
            vmem_limit_bytes=budget,
        ),
    )(x3)

    # Tiny per-sample finish in plain JAX (a few KB of data).
    sums = jnp.sum(sum_out[:, :, :, 0, 0], axis=(1, 2))      # (B,)
    ssqs = jnp.sum(ssq_out[:, :, :, 0, 0], axis=(1, 2))      # (B,)
    mean = sums * inv_n
    # One-pass variance here (second full read of x would cost HBM traffic);
    # clamp guards catastrophic cancellation when |mean| >> std.
    var = jnp.maximum(ssqs * inv_n - mean * mean, 0.0)
    inv_std = lax.rsqrt(var + jnp.float32(eps))
    mean3 = mean.reshape(B, 1, 1).astype(jnp.float32)
    istd3 = inv_std.reshape(B, 1, 1).astype(jnp.float32)

    # Pass 2: apply.  scale/bias computed in-kernel from tiny per-sample blocks
    # and per-channel gamma/beta -- no (B, R, 1) intermediates.
    out3 = pl.pallas_call(
        _gln_apply_kernel,
        out_shape=jax.ShapeDtypeStruct((B, C, S), x.dtype),
        grid_spec=pltpu.PrefetchScalarGridSpec(
            num_scalar_prefetch=0,
            grid=(B, nc, ns),
            in_specs=[
                pl.BlockSpec((1, Ct, St), lambda b, ci, si: (b, ci, si)),
                pl.BlockSpec((1, Ct, 1), lambda b, ci, si: (0, ci, 0)),
                pl.BlockSpec((1, Ct, 1), lambda b, ci, si: (0, ci, 0)),
                pl.BlockSpec((1, 1, 1), lambda b, ci, si: (b, 0, 0)),
                pl.BlockSpec((1, 1, 1), lambda b, ci, si: (b, 0, 0)),
            ],
            out_specs=pl.BlockSpec((1, Ct, St), lambda b, ci, si: (b, ci, si)),
        ),
        compiler_params=pltpu.CompilerParams(
            dimension_semantics=("parallel", "parallel", "parallel"),
            vmem_limit_bytes=budget,
        ),
    )(x3, g3, b3, mean3, istd3)
    return out3.reshape(orig_shape)


def mlayernorm_ref(x, gamma, beta, eps: float = 1e-8):
    """Pure-JAX reference mirroring the PyTorch semantics."""
    dims = tuple(range(1, x.ndim))
    mean = jnp.mean(x, axis=dims, keepdims=True)
    var = jnp.mean((x - mean) ** 2, axis=dims, keepdims=True)
    normed = (x - mean) / jnp.sqrt(var + eps)
    shape = (1, x.shape[1]) + (1,) * (x.ndim - 2)
    return gamma.reshape(shape) * normed + beta.reshape(shape)


if __name__ == "__main__":
    key = jax.random.PRNGKey(0)
    ks = jax.random.split(key, 8)

    # (name, shape, kwargs).  The "tiled_*" cases force the two-pass fallback;
    # "tiled_edges" uses non-divisible tiles to exercise masked partial blocks
    # on both the channel and spatial axes.
    cases = [
        ("full_aligned", (2, 4, 16, 16), {}),
        ("full_unaligned", (2, 4, 10, 10), {}),
        ("full_3d", (2, 5, 37), {}),
        ("tiled_edges", (2, 12, 20, 20),
         {"max_full_elems": 0, "tile_channels": 8, "tile_spatial": 256}),
        ("tiled_auto", (2, 16, 8, 32), {"max_full_elems": 0}),
    ]

    for i, (name, shape, kw) in enumerate(cases):
        C = shape[1]
        x = jax.random.normal(ks[i], shape, dtype=jnp.float32)
        # Module initializes gamma/beta to ones; use non-trivial deterministic values
        # to also verify the per-channel affine mapping.
        gamma = 1.0 + 0.1 * jnp.arange(C, dtype=jnp.float32)
        beta = 0.05 * jnp.arange(C, dtype=jnp.float32) - 0.3

        out = jax.block_until_ready(mlayernorm(x, gamma, beta, **kw))
        ref = mlayernorm_ref(x, gamma, beta)
        assert out.shape == x.shape and out.dtype == x.dtype, f"shape/dtype mismatch: {name}"
        assert jnp.allclose(out, ref, atol=1e-4, rtol=1e-4), f"value mismatch: {name}"

    print("KERNEL_OK")
</pallas_src>

<mosaic_0001>
module attributes {stable_mosaic.version = 11 : i64} {
  func.func @_gln_full_kernel(%arg0: i32, %arg1: memref<1x4x256xf32, #tpu.memory_space<vmem>>, %arg2: memref<1x4x1xf32, #tpu.memory_space<vmem>>, %arg3: memref<1x4x1xf32, #tpu.memory_space<vmem>>, %arg4: memref<1x4x256xf32, #tpu.memory_space<vmem>>) attributes {dimension_semantics = [#tpu.dimension_semantics<parallel>], iteration_bounds = array<i64: 2>, scalar_prefetch = 0 : i64, scratch_operands = 0 : i64, tpu.core_type = #tpu.core_type<tc>, window_params = [{transform_indices = @transform_0, window_bounds = array<i64: 1, 4, 256>}, {pipeline_mode = #tpu.pipeline_mode<synchronous>, transform_indices = @transform_1, window_bounds = array<i64: 1, 4, 1>}, {pipeline_mode = #tpu.pipeline_mode<synchronous>, transform_indices = @transform_2, window_bounds = array<i64: 1, 4, 1>}, {transform_indices = @transform_3, window_bounds = array<i64: 1, 4, 256>}]} {
    %c0 = arith.constant 0 : index
    %c0_0 = arith.constant 0 : index
    %c0_1 = arith.constant 0 : index
    %0 = vector.load %arg1[%c0, %c0_0, %c0_1] : memref<1x4x256xf32, #tpu.memory_space<vmem>>, vector<1x4x256xf32>
    %1 = vector.shape_cast %0 : vector<1x4x256xf32> to vector<1x1x4x256xf32>
    %cst = arith.constant dense<0.000000e+00> : vector<1xf32>
    %2 = vector.multi_reduction <add>, %1, %cst [1, 2, 3] : vector<1x1x4x256xf32> to vector<1xf32>
    %3 = vector.shape_cast %2 : vector<1xf32> to vector<1x1x1x1xf32>
    %4 = vector.extract %3[0, 0, 0, 0] : f32 from vector<1x1x1x1xf32>
    %cst_2 = arith.constant 9.765625E-4 : f32
    %5 = arith.mulf %4, %cst_2 : f32
    %c0_3 = arith.constant 0 : index
    %c0_4 = arith.constant 0 : index
    %c0_5 = arith.constant 0 : index
    %6 = vector.load %arg1[%c0_3, %c0_4, %c0_5] : memref<1x4x256xf32, #tpu.memory_space<vmem>>, vector<1x4x256xf32>
    %7 = vector.broadcast %5 : f32 to vector<1x4x256xf32>
    %8 = arith.subf %6, %7 : vector<1x4x256xf32>
    %9 = arith.mulf %8, %8 : vector<1x4x256xf32>
    %10 = vector.shape_cast %9 : vector<1x4x256xf32> to vector<1x1x4x256xf32>
    %cst_6 = arith.constant dense<0.000000e+00> : vector<1xf32>
    %11 = vector.multi_reduction <add>, %10, %cst_6 [1, 2, 3] : vector<1x1x4x256xf32> to vector<1xf32>
    %12 = vector.shape_cast %11 : vector<1xf32> to vector<1x1x1x1xf32>
    %13 = vector.extract %12[0, 0, 0, 0] : f32 from vector<1x1x1x1xf32>
    %cst_7 = arith.constant 9.765625E-4 : f32
    %14 = arith.mulf %13, %cst_7 : f32
    %cst_8 = arith.constant 9.99999993E-9 : f32
    %15 = arith.addf %14, %cst_8 : f32
    %16 = math.rsqrt %15 : f32
    %c0_9 = arith.constant 0 : index
    %c0_10 = arith.constant 0 : index
    %c0_11 = arith.constant 0 : index
    %17 = vector.load %arg2[%c0_9, %c0_10, %c0_11] : memref<1x4x1xf32, #tpu.memory_space<vmem>>, vector<1x4x1xf32>
    %18 = vector.broadcast %16 : f32 to vector<1x4x1xf32>
    %19 = arith.mulf %17, %18 : vector<1x4x1xf32>
    %c0_12 = arith.constant 0 : index
    %c0_13 = arith.constant 0 : index
    %c0_14 = arith.constant 0 : index
    %20 = vector.load %arg3[%c0_12, %c0_13, %c0_14] : memref<1x4x1xf32, #tpu.memory_space<vmem>>, vector<1x4x1xf32>
    %21 = vector.broadcast %5 : f32 to vector<1x4x1xf32>
    %22 = arith.mulf %21, %19 : vector<1x4x1xf32>
    %23 = arith.subf %20, %22 : vector<1x4x1xf32>
    %c0_15 = arith.constant 0 : index
    %c0_16 = arith.constant 0 : index
    %c0_17 = arith.constant 0 : index
    %24 = vector.load %arg1[%c0_15, %c0_16, %c0_17] : memref<1x4x256xf32, #tpu.memory_space<vmem>>, vector<1x4x256xf32>
    %25 = vector.broadcast %19 : vector<1x4x1xf32> to vector<1x4x256xf32>
    %26 = arith.mulf %24, %25 : vector<1x4x256xf32>
    %27 = vector.broadcast %23 : vector<1x4x1xf32> to vector<1x4x256xf32>
    %28 = arith.addf %26, %27 : vector<1x4x256xf32>
    %c0_18 = arith.constant 0 : index
    %c0_19 = arith.constant 0 : index
    %c0_20 = arith.constant 0 : index
    %29 = vector.load %arg4[%c0_18, %c0_19, %c0_20] : memref<1x4x256xf32, #tpu.memory_space<vmem>>, vector<1x4x256xf32>
    tpu.vector_store %arg4[%c0_18, %c0_19, %c0_20], %28 {strides = array<i32>} : memref<1x4x256xf32, #tpu.memory_space<vmem>>, vector<1x4x256xf32>,
    return
  }
  func.func @transform_0(%arg0: i32) -> (i32, i32, i32) {
    %c0_i32 = arith.constant 0 : i32
    %c0_i32_0 = arith.constant 0 : i32
    %c0_i32_1 = arith.constant 0 : i32
    return %arg0, %c0_i32, %c0_i32_0 : i32, i32, i32
  }
  func.func @transform_1(%arg0: i32) -> (i32, i32, i32) {
    %c0_i32 = arith.constant 0 : i32
    %c0_i32_0 = arith.constant 0 : i32
    %c0_i32_1 = arith.constant 0 : i32
    %c0_i32_2 = arith.constant 0 : i32
    return %c0_i32, %c0_i32_0, %c0_i32_1 : i32, i32, i32
  }
  func.func @transform_2(%arg0: i32) -> (i32, i32, i32) {
    %c0_i32 = arith.constant 0 : i32
    %c0_i32_0 = arith.constant 0 : i32
    %c0_i32_1 = arith.constant 0 : i32
    %c0_i32_2 = arith.constant 0 : i32
    return %c0_i32, %c0_i32_0, %c0_i32_1 : i32, i32, i32
  }
  func.func @transform_3(%arg0: i32) -> (i32, i32, i32) {
    %c0_i32 = arith.constant 0 : i32
    %c0_i32_0 = arith.constant 0 : i32
    %c0_i32_1 = arith.constant 0 : i32
    return %arg0, %c0_i32, %c0_i32_0 : i32, i32, i32
  }
}

</mosaic_0001>

<llo_original>
// kernel: tpu_custom_call.1
$region0: #{tpu_custom_call.1}
  #allocation0 [shape = 'u32[]', space=smem, size = 0x4, offset = 0x4, fixed_abs, tag = 'smem constant byte address 0x4 - core index']
  #allocation1 [shape = 'u32[144,128]{1,0:T(1,128)}', space=vmem, size = 0x12000, scoped, tag = 'internal scratch']
  %s0 = inlined_call_operand.hbm [shape: f32[2,4,256], index: 0, kind: input, shape index: {}]
  %s1 = inlined_call_operand.vmem [shape: f32[1,4,1], index: 1, kind: input, shape index: {}]
  %s2 = inlined_call_operand.vmem [shape: f32[1,4,1], index: 2, kind: input, shape index: {}]
  %s3 = inlined_call_operand.hbm [shape: f32[2,4,256], index: 3, kind: output, shape index: {}]
  %s4 = sld [smem:[#allocation0]]
  $region49: #{tpu_custom_call.1} parent=0
    _
  %s6 = ssub.s32 1, %s4
  %s7 = scalar_select 0, %s6, %s4
  $region1: #{tpu_custom_call.1} parent=0
    #allocation2 [shape = 'u8[8192]{0}', space=vmem, size = 0x2000, scoped, tag = 'input window, operand 0']
    #allocation3 [shape = 's32[2]{0}', space=sflag, size = 0x8, scoped, tag = 'scoped memory for tpu_custom_call.1']
    #allocation4 [shape = 's32[2]{0}', space=sflag, size = 0x8, scoped, tag = 'scoped memory for tpu_custom_call.1']
    #allocation5 [shape = 'u8[8192]{0}', space=vmem, size = 0x2000, scoped, tag = 'output window, operand 0']
    %8 = vsyncpa [#allocation3], 0
    %s9 = scalar_lea.sflag [#allocation3], 1
    %10 = vsyncpa %s9, 0
    %11 = vsyncpa [#allocation4], 0
    %s12 = scalar_lea.sflag [#allocation4], 1
    %13 = vsyncpa %s12, 0
    loop: start=0, step=1, limit=4
    $region2: #{tpu_custom_call.1} parent=1 // loop_pre_header
      _
    $region3: #{tpu_custom_call.1} parent=1 // loop_header
      %s15 = sphi 0, %s19
      %p16 = scmp.ge.s32.totalorder %s15, 4
      %s25 = sphi 0, %s27
      %s28 = sphi 0, %s25
      %s29 = sphi 0, %s28
      %s45 = sphi 0, %s29
      %s49 = sphi 0, %s49
      %s51 = sphi 0, %s49
      %s52 = sphi 0, %s51
      %s66 = sphi 0, %s52
      %s70 = sphi 0, %s70
      %s72 = sphi 0, %s70
      %s73 = sphi 0, %s72
      %s87 = sphi 0, %s73
      %s93 = sphi 0, %s95
      %s96 = sphi 0, %s93
      %s97 = sphi 0, %s96
      %s113 = sphi 0, %s97
    $region4: #{tpu_custom_call.1} parent=1 // loop_header_branch
      %18 = sbr.rel (%p16) target = $region8
    $region5: #{tpu_custom_call.1} parent=1 // loop_body
      %s20 = ssub.s32 %s15, 1
      %s21 = ssub.s32 %s15, 2
      %s22 = sadd.s32 %s15, 1
      %s23 = ssub.s32 %s15, %s22
      %p24 = scmp.eq.s32.totalorder %s23, 0
      %s26 = sadd.s32 %s25, 1
      %s27 = scalar_select %p24, %s25, %s26
      %p30 = pneg %p24
      %p31 = scmp.eq.s32.totalorder %s15, 1
      %p32 = por %p30, %p31
      %p33 = scmp.ne.s32.totalorder %s25, %s28
      %p34 = scmp.eq.s32.totalorder %s15, 0
      %p35 = por %p33, %p34
      %p36 = scmp.ne.s32.totalorder %s25, %s28
      %p37 = scmp.eq.s32.totalorder %s20, 1
      %p38 = por %p36, %p37
      %p39 = scmp.ne.s32.totalorder %s28, %s29
      %p40 = scmp.eq.s32.totalorder %s20, 0
      %p41 = por %p39, %p40
      %p42 = scmp.ne.s32.totalorder %s28, %s29
      %p43 = scmp.eq.s32.totalorder %s21, 1
      %p44 = por %p42, %p43
      %p46 = scmp.ne.s32.totalorder %s29, %s45
      %p47 = scmp.eq.s32.totalorder %s21, 0
      %p48 = por %p46, %p47
      %s50 = sadd.s32 %s49, 1
      %p53 = scmp.eq.s32.totalorder %s15, 1
      %p54 = scmp.ne.s32.totalorder %s49, %s51
      %p55 = scmp.eq.s32.totalorder %s15, 0
      %p56 = por %p54, %p55
      %p57 = scmp.ne.s32.totalorder %s49, %s51
      %p58 = scmp.eq.s32.totalorder %s20, 1
      %p59 = por %p57, %p58
      %p60 = scmp.ne.s32.totalorder %s51, %s52
      %p61 = scmp.eq.s32.totalorder %s20, 0
      %p62 = por %p60, %p61
      %p63 = scmp.ne.s32.totalorder %s51, %s52
      %p64 = scmp.eq.s32.totalorder %s21, 1
      %p65 = por %p63, %p64
      %p67 = scmp.ne.s32.totalorder %s52, %s66
      %p68 = scmp.eq.s32.totalorder %s21, 0
      %p69 = por %p67, %p68
      %s71 = sadd.s32 %s70, 1
      %p74 = scmp.eq.s32.totalorder %s15, 1
      %p75 = scmp.ne.s32.totalorder %s70, %s72
      %p76 = scmp.eq.s32.totalorder %s15, 0
      %p77 = por %p75, %p76
      %p78 = scmp.ne.s32.totalorder %s70, %s72
      %p79 = scmp.eq.s32.totalorder %s20, 1
      %p80 = por %p78, %p79
      %p81 = scmp.ne.s32.totalorder %s72, %s73
      %p82 = scmp.eq.s32.totalorder %s20, 0
      %p83 = por %p81, %p82
      %p84 = scmp.ne.s32.totalorder %s72, %s73
      %p85 = scmp.eq.s32.totalorder %s21, 1
      %p86 = por %p84, %p85
      %p88 = scmp.ne.s32.totalorder %s73, %s87
      %p89 = scmp.eq.s32.totalorder %s21, 0
      %p90 = por %p88, %p89
      %s91 = ssub.s32 %s15, %s22
      %p92 = scmp.eq.s32.totalorder %s91, 0
      %s94 = sadd.s32 %s93, 1
      %s95 = scalar_select %p92, %s93, %s94
      %p98 = pneg %p92
      %p99 = scmp.eq.s32.totalorder %s15, 1
      %p100 = por %p98, %p99
      %p101 = scmp.ne.s32.totalorder %s93, %s96
      %p102 = scmp.eq.s32.totalorder %s15, 0
      %p103 = por %p101, %p102
      %p104 = scmp.ne.s32.totalorder %s93, %s96
      %p105 = scmp.eq.s32.totalorder %s20, 1
      %p106 = por %p104, %p105
      %p107 = scmp.ne.s32.totalorder %s96, %s97
      %p108 = scmp.eq.s32.totalorder %s20, 0
      %p109 = por %p107, %p108
      %p110 = scmp.ne.s32.totalorder %s96, %s97
      %p111 = scmp.eq.s32.totalorder %s21, 1
      %p112 = por %p110, %p111
      %p114 = scmp.ne.s32.totalorder %s97, %s113
      %p115 = scmp.eq.s32.totalorder %s21, 0
      %p116 = por %p114, %p115
      %p117 = scmp.le.s32.totalorder 1, %s15
      %p118 = scmp.lt.s32.totalorder %s15, 3
      %p119 = pnand %p117, %p118
      %p120 = pneg %p119
      // Predicated region
      $region9: #{tpu_custom_call.1} parent=5 // pred_check
        _
      $region10: #{tpu_custom_call.1} parent=5 // pred_check_branch
        %122 = sbr.rel (%p119) target = $region12
      $region11: #{tpu_custom_call.1} parent=5 // pred_region
        %s123 = ssub.s32 %s15, 1
        // Predicated region
        $region13: #{tpu_custom_call.1} parent=11 // pred_check
          %p124 = pneg %p62
        $region14: #{tpu_custom_call.1} parent=11 // pred_check_branch
          %126 = sbr.rel (%p124) target = $region16
        $region15: #{tpu_custom_call.1} parent=11 // pred_region
          _
        $region16: #{tpu_custom_call.1} parent=11 // pred_fallthru
          _
        // Predicated region
        $region17: #{tpu_custom_call.1} parent=11 // pred_check
          %p127 = pneg %p83
        $region18: #{tpu_custom_call.1} parent=11 // pred_check_branch
          %129 = sbr.rel (%p127) target = $region20
        $region19: #{tpu_custom_call.1} parent=11 // pred_region
          _
        $region20: #{tpu_custom_call.1} parent=11 // pred_fallthru
          _
      $region12: #{tpu_custom_call.1} parent=5 // pred_fallthru
        _
      %p130 = scmp.lt.s32.totalorder %s15, 2
      // Predicated region
      $region21: #{tpu_custom_call.1} parent=5 // pred_check
        %p131 = pneg %p130
      $region22: #{tpu_custom_call.1} parent=5 // pred_check_branch
        %133 = sbr.rel (%p131) target = $region24
      $region23: #{tpu_custom_call.1} parent=5 // pred_region
        // Predicated region
        $region25: #{tpu_custom_call.1} parent=23 // pred_check
          %p134 = pneg %p35
        $region26: #{tpu_custom_call.1} parent=23 // pred_check_branch
          %136 = sbr.rel (%p134) target = $region28
        $region27: #{tpu_custom_call.1} parent=23 // pred_region
          %s137 = sand.u32 %s25, 1
          %s138 = scalar_lea.sflag [#allocation3], %s137
          %s139 = sand.u32 %s25, 1
          %s140 = smul.addr %s139, 8
          %s141 = scalar_lea.vmem [#allocation2], %s140
          %s143 = ssub.s32 128, 128
          %144 = vsyncadd %s138, %s143
          %s145 = smul.addr %s15, 2
          %s146 = smul.addr %s145, 64
          %s147 = scalar_lea.hbm %s0, %s146
          %s149 = sshll.u32 %s141, 4
          %s150 = int_to_ptr.vmem [resolvable:$true] %s149
          %152 = dma.hbm_to_vmem [thread:$0]  %s147, 128, %s150, %s138
        $region28: #{tpu_custom_call.1} parent=23 // pred_fallthru
          _
      $region24: #{tpu_custom_call.1} parent=5 // pred_fallthru
        _
      %p153 = scmp.le.s32.totalorder 1, %s15
      %p154 = scmp.lt.s32.totalorder %s15, 3
      %p155 = pnand %p153, %p154
      %p156 = pneg %p155
      // Predicated region
      $region29: #{tpu_custom_call.1} parent=5 // pred_check
        _
      $region30: #{tpu_custom_call.1} parent=5 // pred_check_branch
        %158 = sbr.rel (%p155) target = $region32
      $region31: #{tpu_custom_call.1} parent=5 // pred_region
        %s159 = ssub.s32 %s15, 1
        %s160 = sand.u32 %s28, 1
        %s161 = scalar_lea.sflag [#allocation3], %s160
        %s162 = sand.u32 %s28, 1
        %s163 = smul.addr %s162, 8
        %s164 = scalar_lea.vmem [#allocation2], %s163
        // Predicated region
        $region33: #{tpu_custom_call.1} parent=31 // pred_check
          %p165 = pneg %p41
        $region34: #{tpu_custom_call.1} parent=31 // pred_check_branch
          %167 = sbr.rel (%p165) target = $region36
        $region35: #{tpu_custom_call.1} parent=31 // pred_region
          %168 = dma.done %s161, 128
        $region36: #{tpu_custom_call.1} parent=31 // pred_fallthru
          _
        %s169 = sand.u32 %s28, 1
        %s170 = scalar_lea.sflag [#allocation3], %s169
        %s171 = sand.u32 %s28, 1
        %s172 = smul.addr %s171, 8
        %s173 = scalar_lea.vmem [#allocation2], %s172
        %p174 = pneg %p41
        %p175 = pneg %p38
        %p176 = pneg %p62
        %p177 = pneg %p59
        %p178 = pneg %p83
        %p179 = pneg %p80
        %p180 = pneg %p109
        %p181 = pneg %p106
        %s182 = sand.u32 %s96, 1
        %s183 = scalar_lea.sflag [#allocation4], %s182
        %s184 = sand.u32 %s96, 1
        %s185 = smul.addr %s184, 8
        %s186 = scalar_lea.vmem [#allocation5], %s185
        %v187 = vld [vmem:[%s164] sm:$0xff]
        %v189 = vcombine.high %v187, %v187
        %vm191 = vcmask 1043456
        %v192 = vsel %vm191, %v187, 0.0
        %v193 = vsel %vm191, %v189, 0.0
        %v194 = vadd.f32 %v192, %v193
        %195 = vadd.xlane.f32.xlu0 %v194
        %v196 = vpop.xlane.xlu0 %195
        %v197 = vrot.slane %v196, 4
        %v198 = vadd.f32 %v196, %v197
        %v199 = vrot.slane %v198, 2
        %v200 = vadd.f32 %v198, %v199
        %v201 = vrot.slane %v200, 1
        %v202 = vadd.f32 %v200, %v201
        %s203 = vtos %v202
        %s204 = smul.f32 %s203, 0.0009765625
        %v205 = vstv %s204
        %v206 = vsub.f32 %v187, %v205
        %v207 = vmul.f32 %v206, %v206
        %v209 = vcombine.high %v207, %v207
        %v211 = vsel %vm191, %v207, 0.0
        %v212 = vsel %vm191, %v209, 0.0
        %v213 = vadd.f32 %v211, %v212
        %214 = vadd.xlane.f32.xlu0 %v213
        %v215 = vpop.xlane.xlu0 %214
        %v216 = vrot.slane %v215, 4
        %v217 = vadd.f32 %v215, %v216
        %v218 = vrot.slane %v217, 2
        %v219 = vadd.f32 %v217, %v218
        %v220 = vrot.slane %v219, 1
        %v221 = vadd.f32 %v219, %v220
        %s222 = vtos %v221
        %s223 = smul.f32 %s222, 0.0009765625
        %s224 = sadd.f32 %s223, 1e-08
        %v225 = vstv %s224
        %v226 = vrsqrt.pop %v225
        %s227 = vtos %v226
        %v228 = vld [vmem:[%s1] sm:$0xf]
        %v229 = vstv %s227
        %v230 = vmul.f32 %v228, %v229
        %v231 = vld [vmem:[%s2] sm:$0xf]
        %v232 = vmul.f32 %v205, %v230
        %v233 = vsub.f32 %v231, %v232
        %235 = vset.pattern.permute.xlu0 0
        %236 = vperm.xlu0 %235, %v230
        %v237 = vpop.permute.xlu0 %236
        %v239 = vunpack.c.l.s4 839922192
        %v240 = vunpack.c.0.s8 %v239
        %v241 = vlaneseq
        %v242 = vshrl.u32 %v241, 7
        %v243 = vsub.s32 %v240, %v242
        %v244 = vrot.slane %v237, %v243
        %v246 = vmul.f32 %v187, %v244
        %248 = vset.pattern.permute.xlu0 0
        %249 = vperm.xlu0 %248, %v233
        %v250 = vpop.permute.xlu0 %249
        %v252 = vunpack.c.l.s4 839922192
        %v253 = vunpack.c.0.s8 %v252
        %v254 = vlaneseq
        %v255 = vshrl.u32 %v254, 7
        %v256 = vsub.s32 %v253, %v255
        %v257 = vrot.slane %v250, %v256
        %v259 = vadd.f32 %v246, %v257
        %260 = vst [vmem:[%s186] sm:$0xff] %v259
        %s261 = sand.u32 %s96, 1
        %s262 = scalar_lea.sflag [#allocation4], %s261
        %s263 = sand.u32 %s96, 1
        %s264 = smul.addr %s263, 8
        %s265 = scalar_lea.vmem [#allocation5], %s264
        // Predicated region
        $region37: #{tpu_custom_call.1} parent=31 // pred_check
          %p266 = pneg %p106
        $region38: #{tpu_custom_call.1} parent=31 // pred_check_branch
          %268 = sbr.rel (%p266) target = $region40
        $region39: #{tpu_custom_call.1} parent=31 // pred_region
          %s270 = ssub.s32 128, 128
          %271 = vsyncadd %s262, %s270
          %s272 = smul.addr %s20, 2
          %s273 = smul.addr %s272, 64
          %s274 = scalar_lea.hbm %s3, %s273
          %s276 = sshll.u32 %s265, 4
          %s277 = int_to_ptr.vmem [resolvable:$true] %s276
          %279 = dma.vmem_to_hbm [thread:$0]  %s277, 128, %s274, %s262
        $region40: #{tpu_custom_call.1} parent=31 // pred_fallthru
          _
      $region32: #{tpu_custom_call.1} parent=5 // pred_fallthru
        _
      %p280 = scmp.le.s32.totalorder 2, %s15
      // Predicated region
      $region41: #{tpu_custom_call.1} parent=5 // pred_check
        %p281 = pneg %p280
      $region42: #{tpu_custom_call.1} parent=5 // pred_check_branch
        %283 = sbr.rel (%p281) target = $region44
      $region43: #{tpu_custom_call.1} parent=5 // pred_region
        %s284 = ssub.s32 %s15, 2
        // Predicated region
        $region45: #{tpu_custom_call.1} parent=43 // pred_check
          %p285 = pneg %p112
        $region46: #{tpu_custom_call.1} parent=43 // pred_check_branch
          %287 = sbr.rel (%p285) target = $region48
        $region47: #{tpu_custom_call.1} parent=43 // pred_region
          %s288 = sand.u32 %s97, 1
          %s289 = scalar_lea.sflag [#allocation4], %s288
          %s290 = sand.u32 %s97, 1
          %s291 = smul.addr %s290, 8
          %s292 = scalar_lea.vmem [#allocation5], %s291
          %293 = dma.done %s289, 128
        $region48: #{tpu_custom_call.1} parent=43 // pred_fallthru
          _
      $region44: #{tpu_custom_call.1} parent=5 // pred_fallthru
        _
    $region6: #{tpu_custom_call.1} parent=1 // loop_footer
      %s19 = sadd.s32 1, %s15
    $region7: #{tpu_custom_call.1} parent=1 // loop_footer_branch
      %14 = sbr.rel target = $region3
    $region8: #{tpu_custom_call.1} parent=1 // loop_exit
      _
    %294 = vsyncpa [#allocation3], 1
    %s295 = scalar_lea.sflag [#allocation3], 1
    %296 = vsyncpa %s295, 1
    %297 = vsyncpa [#allocation4], 1
    %s298 = scalar_lea.sflag [#allocation4], 1
    %299 = vsyncpa %s298, 1

</llo_original>
